<compile_context>
chip_gen: v6e
topology: v6e:2x2x1
jax: 0.10.0
libtpu: 0.0.40
codegen_flags: <defaults>
</compile_context>

<pallas_src>
import functools
import math

import jax
import jax.numpy as jnp
from jax import lax
from jax.experimental import pallas as pl
from jax.experimental.pallas import tpu as pltpu


def _round_up(x, m):
    return (x + m - 1) // m * m


def _pick_band_rows(H, W, Cin, Nw, budget_bytes=6 << 20):
    """Largest divisor of H whose per-band VMEM working set fits the budget."""
    wp2 = W + 2
    per_row = wp2 * (
        Nw * 2          # bf16 output block
        + Nw * 4        # f32 matmul accumulator
        + 9 * Cin * 2   # bf16 im2col LHS
        + Cin * 2       # bf16 input block
    )
    th_max = max(1, budget_bytes // max(per_row, 1))
    best = 1
    for d in range(1, H + 1):
        if H % d == 0 and d <= th_max:
            best = d
    return best


# ----------------------------------------------------------------------------
# Pallas kernel: fused upsample(x2 nearest) + conv3x3 + BN + ReLU (one matmul)
# ----------------------------------------------------------------------------
def _up_conv_kernel(x_ref, w_ref, s_ref, o_ref, *, wp2, band_out):
    """One (batch, row-band) tile per grid step.

    x_ref: (1, 1, band_in_pad, Cin) bf16  zero-padded, halo'd band, spatial flattened
    w_ref: (9*Cin, Nw)              bf16  effective per-tap weights (BN scale folded)
    s_ref: (1, Nw)                  f32   per-column shift (conv bias + BN shift)
    o_ref: (1, 1, band_out, Nw)     bf16  4 sub-pixel outputs per input pixel
    """
    xv = x_ref[0, 0]                                   # (band_in_pad, Cin) bf16

    # Build the (band_out, 9*Cin) im2col LHS from 9 contiguous shifted slices of the
    # flattened padded band (no HBM im2col), then ONE K=9*Cin MXU matmul.
    taps = []
    for dy in range(3):
        for dx in range(3):
            base = dy * wp2 + dx
            taps.append(xv[base:base + band_out, :])   # (band_out, Cin)
    lhs = jnp.concatenate(taps, axis=1)                # (band_out, 9*Cin) bf16

    acc = jnp.dot(lhs, w_ref[...], preferred_element_type=jnp.float32)

    # f32 epilogue: folded (conv bias + BatchNorm) shift, ReLU, bf16 store.
    o_ref[0, 0] = jnp.maximum(acc + s_ref[...], 0.0).astype(o_ref.dtype)


# ----------------------------------------------------------------------------
# Wrapper: weight folding + banding + pallas_call + sub-pixel un-shuffle
# ----------------------------------------------------------------------------
def up_conv_forward(x, w, b, gamma, beta, mean, var, eps=1e-5, band_rows=None):
    """x: (B, Cin, H, W) NCHW -> (B, Cout, 2H, 2W) NCHW, matching up_conv.forward.

    # TODO(synk): BatchNorm2d is evaluated in inference mode (running stats);
    # training-mode batch statistics are not reproduced.
    """
    B, Cin, H, W = x.shape
    Cout = w.shape[0]
    wp2 = W + 2

    Nw = _round_up(4 * Cout, 128)                       # lane-dense output width
    TH = band_rows if band_rows is not None else _pick_band_rows(H, W, Cin, Nw)
    assert H % TH == 0, (H, TH)
    nb = H // TH
    band_in = (TH + 2) * wp2                            # halo'd padded rows, flattened
    band_in_pad = _round_up(band_in + 2, 8)             # +2 covers dy=2,dx=2 tap reach
    band_out = TH * wp2                                 # output rows (incl. garbage cols)

    # --- one NCHW->NHWC transpose, bf16 cast, pad, halo'd row bands -----------
    xh = jnp.transpose(x, (0, 2, 3, 1)).astype(jnp.bfloat16)
    xp = jnp.pad(xh, ((0, 0), (1, 1), (1, 1), (0, 0)))              # (B, H+2, W+2, Cin)
    xb = jnp.stack([xp[:, i * TH:i * TH + TH + 2] for i in range(nb)], axis=1)
    xb = xb.reshape(B, nb, band_in, Cin)
    xb = jnp.pad(xb, ((0, 0), (0, 0), (0, band_in_pad - band_in), (0, 0)))

    # --- fold nearest x2 upsample into 4 phase-specific effective 3x3 taps ----
    # M[a, dy, ky] = 1 iff upsampled tap ky (for output phase a) lands on padded
    # original-grid offset dy (dy = offset + 1).
    M0 = jnp.array([[1, 0, 0], [0, 1, 1], [0, 0, 0]], jnp.float32)   # phase a=0
    M1 = jnp.array([[0, 0, 0], [1, 1, 0], [0, 0, 1]], jnp.float32)   # phase a=1
    Mm = jnp.stack([M0, M1])                                         # (2, 3, 3)
    weff = jnp.einsum("ayk,bxl,nckl->yxcabn", Mm, Mm, w.astype(jnp.float32))
    wmat = weff.reshape(9 * Cin, 4 * Cout)               # rows=(dy,dx,cin), cols=(a,b,n)

    # --- fold conv bias + eval-mode BatchNorm into (column scale, shift) ------
    s_bn = gamma.astype(jnp.float32) / jnp.sqrt(var.astype(jnp.float32) + eps)
    t_bn = beta.astype(jnp.float32) - mean.astype(jnp.float32) * s_bn
    wmat = wmat * jnp.tile(s_bn, 4)[None, :]
    shift = jnp.tile(b.astype(jnp.float32) * s_bn + t_bn, 4)

    wmat = jnp.pad(wmat, ((0, 0), (0, Nw - 4 * Cout))).astype(jnp.bfloat16)
    shift = jnp.pad(shift, (0, Nw - 4 * Cout)).reshape(1, Nw).astype(jnp.float32)

    # --- one pallas_call for the whole module ---------------------------------
    kernel = functools.partial(_up_conv_kernel, wp2=wp2, band_out=band_out)
    out = pl.pallas_call(
        kernel,
        out_shape=jax.ShapeDtypeStruct((B, nb, band_out, Nw), jnp.bfloat16),
        grid=(B, nb),
        in_specs=[
            pl.BlockSpec((1, 1, band_in_pad, Cin), lambda ib, ih: (ib, ih, 0, 0)),
            pl.BlockSpec((9 * Cin, Nw), lambda ib, ih: (0, 0)),
            pl.BlockSpec((1, Nw), lambda ib, ih: (0, 0)),
        ],
        out_specs=pl.BlockSpec((1, 1, band_out, Nw), lambda ib, ih: (ib, ih, 0, 0)),
        compiler_params=pltpu.CompilerParams(
            dimension_semantics=("parallel", "parallel"),
            vmem_limit_bytes=32 * 1024 * 1024),
    )(xb, wmat, shift)

    # --- drop pad/garbage cols BEFORE the transpose, un-shuffle phases, NCHW --
    y = out[..., :4 * Cout].reshape(B, nb, TH, wp2, 2, 2, Cout)[:, :, :, :W]
    # axes: (b, band, h, w, a, bb, c) -> (b, c, band, h, a, w, bb)
    y = jnp.transpose(y, (0, 6, 1, 2, 4, 3, 5)).reshape(B, Cout, 2 * H, 2 * W)
    return y.astype(jnp.float32)


# ----------------------------------------------------------------------------
# Pure-JAX reference (correctness check)
# ----------------------------------------------------------------------------
def up_conv_reference(x, w, b, gamma, beta, mean, var, eps=1e-5):
    xu = jnp.repeat(jnp.repeat(x, 2, axis=2), 2, axis=3)          # nearest x2
    y = lax.conv_general_dilated(
        xu, w, window_strides=(1, 1), padding=((1, 1), (1, 1)),
        dimension_numbers=("NCHW", "OIHW", "NCHW"))
    y = y + b[None, :, None, None]
    s = gamma / jnp.sqrt(var + eps)
    t = beta - mean * s
    y = y * s[None, :, None, None] + t[None, :, None, None]
    return jnp.maximum(y, 0.0)


if __name__ == "__main__":
    key = jax.random.PRNGKey(0)
    kx, kw, kb = jax.random.split(key, 3)

    B, Cin, Cout, H, W = 2, 32, 32, 16, 16        # 4*Cout == 128 -> lane-dense output
    x = jax.random.normal(kx, (B, Cin, H, W), jnp.float32)
    w = jax.random.normal(kw, (Cout, Cin, 3, 3), jnp.float32) / math.sqrt(9 * Cin)
    b = jax.random.normal(kb, (Cout,), jnp.float32) * 0.1
    gamma = jnp.full((Cout,), 1.2, jnp.float32)
    beta = jnp.full((Cout,), 0.05, jnp.float32)
    mean = jnp.full((Cout,), 0.02, jnp.float32)
    var = jnp.full((Cout,), 0.9, jnp.float32)

    # band_rows=8 -> 2 row-bands per image: exercises the (B, nbands) grid path.
    fwd = jax.jit(functools.partial(up_conv_forward, band_rows=8))
    out = jax.block_until_ready(fwd(x, w, b, gamma, beta, mean, var))

    assert out.shape == (B, Cout, 2 * H, 2 * W), out.shape
    assert bool(jnp.all(jnp.isfinite(out)))

    ref = up_conv_reference(x, w, b, gamma, beta, mean, var)
    rel_err = jnp.linalg.norm(out - ref) / (jnp.linalg.norm(ref) + 1e-8)
    assert float(rel_err) < 1e-2, float(rel_err)   # bf16 operands + bf16 output

    print("KERNEL_OK")
</pallas_src>

<mosaic_0001>
module attributes {stable_mosaic.version = 11 : i64} {
  func.func @_up_conv_kernel(%arg0: i32, %arg1: i32, %arg2: memref<1x1x184x32xbf16, #tpu.memory_space<vmem>>, %arg3: memref<288x128xbf16, #tpu.memory_space<vmem>>, %arg4: memref<1x128xf32, #tpu.memory_space<vmem>>, %arg5: memref<1x1x144x128xbf16, #tpu.memory_space<vmem>>) attributes {dimension_semantics = [#tpu.dimension_semantics<parallel>, #tpu.dimension_semantics<parallel>], iteration_bounds = array<i64: 2, 2>, scalar_prefetch = 0 : i64, scratch_operands = 0 : i64, tpu.core_type = #tpu.core_type<tc>, window_params = [{transform_indices = @transform_0, window_bounds = array<i64: 1, 1, 184, 32>}, {pipeline_mode = #tpu.pipeline_mode<synchronous>, transform_indices = @transform_1, window_bounds = array<i64: 288, 128>}, {pipeline_mode = #tpu.pipeline_mode<synchronous>, transform_indices = @transform_2, window_bounds = array<i64: 1, 128>}, {transform_indices = @transform_3, window_bounds = array<i64: 1, 1, 144, 128>}]} {
    %c0 = arith.constant 0 : index
    %c0_0 = arith.constant 0 : index
    %c0_1 = arith.constant 0 : index
    %c0_2 = arith.constant 0 : index
    %0 = vector.load %arg2[%c0, %c0_0, %c0_1, %c0_2] : memref<1x1x184x32xbf16, #tpu.memory_space<vmem>>, vector<1x1x184x32xbf16>
    %1 = vector.shape_cast %0 : vector<1x1x184x32xbf16> to vector<184x32xbf16>
    %2 = vector.extract_strided_slice %1 {offsets = [0, 0], sizes = [144, 32], strides = [1, 1]} : vector<184x32xbf16> to vector<144x32xbf16>
    %3 = vector.extract_strided_slice %1 {offsets = [1, 0], sizes = [144, 32], strides = [1, 1]} : vector<184x32xbf16> to vector<144x32xbf16>
    %4 = vector.extract_strided_slice %1 {offsets = [2, 0], sizes = [144, 32], strides = [1, 1]} : vector<184x32xbf16> to vector<144x32xbf16>
    %5 = vector.extract_strided_slice %1 {offsets = [18, 0], sizes = [144, 32], strides = [1, 1]} : vector<184x32xbf16> to vector<144x32xbf16>
    %6 = vector.extract_strided_slice %1 {offsets = [19, 0], sizes = [144, 32], strides = [1, 1]} : vector<184x32xbf16> to vector<144x32xbf16>
    %7 = vector.extract_strided_slice %1 {offsets = [20, 0], sizes = [144, 32], strides = [1, 1]} : vector<184x32xbf16> to vector<144x32xbf16>
    %8 = vector.extract_strided_slice %1 {offsets = [36, 0], sizes = [144, 32], strides = [1, 1]} : vector<184x32xbf16> to vector<144x32xbf16>
    %9 = vector.extract_strided_slice %1 {offsets = [37, 0], sizes = [144, 32], strides = [1, 1]} : vector<184x32xbf16> to vector<144x32xbf16>
    %10 = vector.extract_strided_slice %1 {offsets = [38, 0], sizes = [144, 32], strides = [1, 1]} : vector<184x32xbf16> to vector<144x32xbf16>
    %11 = tpu.concatenate %2, %3, %4, %5, %6, %7, %8, %9, %10 in 1 : vector<144x32xbf16>, vector<144x32xbf16>, vector<144x32xbf16>, vector<144x32xbf16>, vector<144x32xbf16>, vector<144x32xbf16>, vector<144x32xbf16>, vector<144x32xbf16>, vector<144x32xbf16> -> vector<144x288xbf16>
    %c0_3 = arith.constant 0 : index
    %c0_4 = arith.constant 0 : index
    %12 = vector.load %arg3[%c0_3, %c0_4] : memref<288x128xbf16, #tpu.memory_space<vmem>>, vector<288x128xbf16>
    %cst = arith.constant dense<0.000000e+00> : vector<144x128xf32>
    %13 = tpu.matmul %11, %12, %cst {dimension_numbers = #tpu.dot_dimension_numbers<[1], [0], [0], [1], [0, 0, 1, 1], [], []>} : vector<144x288xbf16>, vector<288x128xbf16>, vector<144x128xf32> -> vector<144x128xf32>
    %c0_5 = arith.constant 0 : index
    %c0_6 = arith.constant 0 : index
    %14 = vector.load %arg4[%c0_5, %c0_6] : memref<1x128xf32, #tpu.memory_space<vmem>>, vector<1x128xf32>
    %15 = vector.broadcast %14 : vector<1x128xf32> to vector<144x128xf32>
    %16 = arith.addf %13, %15 : vector<144x128xf32>
    %cst_7 = arith.constant 0.000000e+00 : f32
    %17 = vector.broadcast %cst_7 : f32 to vector<144x128xf32>
    %18 = arith.maximumf %16, %17 : vector<144x128xf32>
    %19 = arith.truncf %18 : vector<144x128xf32> to vector<144x128xbf16>
    %c0_8 = arith.constant 0 : index
    %c0_9 = arith.constant 0 : index
    %c0_10 = arith.constant 0 : index
    %c0_11 = arith.constant 0 : index
    %20 = vector.load %arg5[%c0_8, %c0_9, %c0_10, %c0_11] : memref<1x1x144x128xbf16, #tpu.memory_space<vmem>>, vector<1x1x144x128xbf16>
    %21 = vector.shape_cast %20 : vector<1x1x144x128xbf16> to vector<144x128xbf16>
    %22 = vector.shape_cast %19 : vector<144x128xbf16> to vector<1x1x144x128xbf16>
    tpu.vector_store %arg5[%c0_8, %c0_9, %c0_10, %c0_11], %22 {strides = array<i32>} : memref<1x1x144x128xbf16, #tpu.memory_space<vmem>>, vector<1x1x144x128xbf16>,
    return
  }
  func.func @transform_0(%arg0: i32, %arg1: i32) -> (i32, i32, i32, i32) {
    %c0_i32 = arith.constant 0 : i32
    %c0_i32_0 = arith.constant 0 : i32
    %c0_i32_1 = arith.constant 0 : i32
    return %arg0, %arg1, %c0_i32, %c0_i32_0 : i32, i32, i32, i32
  }
  func.func @transform_1(%arg0: i32, %arg1: i32) -> (i32, i32) {
    %c0_i32 = arith.constant 0 : i32
    %c0_i32_0 = arith.constant 0 : i32
    %c0_i32_1 = arith.constant 0 : i32
    return %c0_i32, %c0_i32_0 : i32, i32
  }
  func.func @transform_2(%arg0: i32, %arg1: i32) -> (i32, i32) {
    %c0_i32 = arith.constant 0 : i32
    %c0_i32_0 = arith.constant 0 : i32
    %c0_i32_1 = arith.constant 0 : i32
    return %c0_i32, %c0_i32_0 : i32, i32
  }
  func.func @transform_3(%arg0: i32, %arg1: i32) -> (i32, i32, i32, i32) {
    %c0_i32 = arith.constant 0 : i32
    %c0_i32_0 = arith.constant 0 : i32
    %c0_i32_1 = arith.constant 0 : i32
    return %arg0, %arg1, %c0_i32, %c0_i32_0 : i32, i32, i32, i32
  }
}

</mosaic_0001>

<llo_original>
// kernel: tile.18
$region0: #{tile.18}
  #allocation0 [shape = 's32[1]{0}', space=sflag, size = 0x4, scoped, tag = 'scoped memory for tile.18']
  %s0 = inlined_call_operand.vmem [shape: f32[32], index: 0, kind: input, shape index: {}]
  %s1 = inlined_call_operand.vmem [shape: f32[4,32], index: 1, kind: output, shape index: {}]
  // Predicated region
  $region2: #{tile.18} parent=0 // pred_check
    _
  $region3: #{tile.18} parent=0 // pred_check_branch
    %3 = sbr.rel (0) target = $region5
  $region4: #{tile.18} parent=0 // pred_region
    _
  $region5: #{tile.18} parent=0 // pred_fallthru
    _
  %v4 = vld [vmem:[%s0] ss:$0 sm:$0xff]
  %5 = vst [vmem:[%s1] sm:$0xf] %v4

// kernel: mul.8
$region0: #{mul.8}
  %s0 = inlined_call_operand.vmem [shape: f32[4,32], index: 0, kind: input, shape index: {}]
  %s1 = inlined_call_operand.vmem [shape: f32[128], index: 1, kind: output, shape index: {}]
  $region1: #{mul.8} parent=0
    #allocation0 [shape = 'u8[4096]{0}', space=vmem, size = 0x1000, scoped, tag = 'scoped mem for output reshape']
    #allocation1 [shape = 'u8[4096]{0}', space=vmem, size = 0x1000, scoped, tag = 'scoped mem for input reshape']
    %s3 = sshll.u32 1, 4
    %s4 = ssub.s32 %s3, 1
    %v5 = vld [vmem:[%s0] sm:%s4]
    %6 = vst [vmem:[#allocation1] sm:%s4] %v5
    %v7 = vld [vmem:[#allocation1] sm:$0x1]
    %vm8 = vcmask 261120
    %9 = vst.msk [vmem:[#allocation0] sm:$0x1] %vm8, %v7
    %s10 = scalar_lea.vmem [#allocation1], 3
    %v11 = vld [vmem:[%s10] sm:$0x1]
    %12 = vrot.lane.b32.xlu0 %v11, 96
    %v13 = vpop.permute.xlu0 %12
    %vm14 = vcmask 1048320
    %15 = vst.msk [vmem:[#allocation0] sm:$0x1] %vm14, %v13
    %s16 = scalar_lea.vmem [#allocation1], 2
    %v17 = vld [vmem:[%s16] sm:$0x1]
    %18 = vrot.lane.b32.xlu0 %v17, 64
    %v19 = vpop.permute.xlu0 %18
    %vm20 = vcmask 785920
    %21 = vst.msk [vmem:[#allocation0] sm:$0x1] %vm20, %v19
    %s22 = scalar_lea.vmem [#allocation1], 1
    %v23 = vld [vmem:[%s22] sm:$0x1]
    %24 = vrot.lane.b32.xlu0 %v23, 32
    %v25 = vpop.permute.xlu0 %24
    %vm26 = vcmask 523520
    %27 = vst.msk [vmem:[#allocation0] sm:$0x1] %vm26, %v25
    %s29 = sshll.u32 1, 1
    %s30 = ssub.s32 %s29, 1
    %v32 = vld [vmem:[#allocation0] sm:%s30]
    %s33 = sshll.u32 1, 1
    %s34 = ssub.s32 %s33, 1
    %35 = vst [vmem:[%s1] sm:%s34] %v32

// kernel: up_conv_forward.1
$region0: #{up_conv_forward.1}
  #allocation0 [shape = 'u32[]', space=smem, size = 0x4, offset = 0x4, fixed_abs, tag = 'smem constant byte address 0x4 - core index']
  #allocation1 [shape = 'u32[144,128]{1,0:T(1,128)}', space=vmem, size = 0x12000, scoped, tag = 'internal scratch']
  %s0 = inlined_call_operand.vmem [shape: bf16[2,2,184,32], index: 0, kind: input, shape index: {}]
  %s1 = inlined_call_operand.vmem [shape: bf16[288,128], index: 1, kind: input, shape index: {}]
  %s2 = inlined_call_operand.vmem [shape: f32[1,128], index: 2, kind: input, shape index: {}]
  %s3 = inlined_call_operand.vmem [shape: bf16[2,2,144,128], index: 3, kind: output, shape index: {}]
  %s4 = sld [smem:[#allocation0]]
  $region45: #{up_conv_forward.1} parent=0
    _
  %s6 = ssub.s32 1, %s4
  %s7 = scalar_select 0, %s6, %s4
  loop: start=0, step=1, limit=6
  $region2: #{up_conv_forward.1} parent=0 // loop_pre_header
    _
  $region3: #{up_conv_forward.1} parent=0 // loop_header
    %s9 = sphi 0, %s13
    %p10 = scmp.ge.s32.totalorder %s9, 6
    %s16 = sphi 0, %s28
    %s17 = sphi 0, %s24
    %s18 = sphi 0, %s16
    %s19 = sphi 0, %s17
    %s20 = sphi 0, %s18
    %s21 = sphi 0, %s19
    %s33 = sphi 0, %s35
    %s36 = sphi 0, %s33
    %s37 = sphi 0, %s36
    %s53 = sphi 0, %s37
    %s57 = sphi 0, %s57
    %s59 = sphi 0, %s57
    %s60 = sphi 0, %s59
    %s74 = sphi 0, %s60
    %s78 = sphi 0, %s78
    %s80 = sphi 0, %s78
    %s81 = sphi 0, %s80
    %s95 = sphi 0, %s81
    %s103 = sphi 0, %s105
    %s106 = sphi 0, %s103
    %s107 = sphi 0, %s106
    %s123 = sphi 0, %s107
  $region4: #{up_conv_forward.1} parent=0 // loop_header_branch
    %12 = sbr.rel (%p10) target = $region8
  $region5: #{up_conv_forward.1} parent=0 // loop_body
    %s14 = ssub.s32 %s9, 1
    %s15 = ssub.s32 %s9, 2
    %s22 = sadd.s32 1, %s17
    %p23 = scmp.ge.s32.totalorder %s22, 2
    %s24 = scalar_select %p23, 0, %s22
    %s25 = sadd.s32 1, %s16
    %s26 = scalar_select %p23, %s25, %s16
    %p27 = scmp.ge.s32.totalorder %s26, 2
    %s28 = scalar_select %p27, 0, %s26
    %s29 = ssub.s32 %s16, %s28
    %s30 = ssub.s32 %s17, %s24
    %s31 = sor.u32 %s29, %s30
    %p32 = scmp.eq.s32.totalorder %s31, 0
    %s34 = sadd.s32 %s33, 1
    %s35 = scalar_select %p32, %s33, %s34
    %p38 = pneg %p32
    %p39 = scmp.eq.s32.totalorder %s9, 3
    %p40 = por %p38, %p39
    %p41 = scmp.ne.s32.totalorder %s33, %s36
    %p42 = scmp.eq.s32.totalorder %s9, 0
    %p43 = por %p41, %p42
    %p44 = scmp.ne.s32.totalorder %s33, %s36
    %p45 = scmp.eq.s32.totalorder %s14, 3
    %p46 = por %p44, %p45
    %p47 = scmp.ne.s32.totalorder %s36, %s37
    %p48 = scmp.eq.s32.totalorder %s14, 0
    %p49 = por %p47, %p48
    %p50 = scmp.ne.s32.totalorder %s36, %s37
    %p51 = scmp.eq.s32.totalorder %s15, 3
    %p52 = por %p50, %p51
    %p54 = scmp.ne.s32.totalorder %s37, %s53
    %p55 = scmp.eq.s32.totalorder %s15, 0
    %p56 = por %p54, %p55
    %s58 = sadd.s32 %s57, 1
    %p61 = scmp.eq.s32.totalorder %s9, 3
    %p62 = scmp.ne.s32.totalorder %s57, %s59
    %p63 = scmp.eq.s32.totalorder %s9, 0
    %p64 = por %p62, %p63
    %p65 = scmp.ne.s32.totalorder %s57, %s59
    %p66 = scmp.eq.s32.totalorder %s14, 3
    %p67 = por %p65, %p66
    %p68 = scmp.ne.s32.totalorder %s59, %s60
    %p69 = scmp.eq.s32.totalorder %s14, 0
    %p70 = por %p68, %p69
    %p71 = scmp.ne.s32.totalorder %s59, %s60
    %p72 = scmp.eq.s32.totalorder %s15, 3
    %p73 = por %p71, %p72
    %p75 = scmp.ne.s32.totalorder %s60, %s74
    %p76 = scmp.eq.s32.totalorder %s15, 0
    %p77 = por %p75, %p76
    %s79 = sadd.s32 %s78, 1
    %p82 = scmp.eq.s32.totalorder %s9, 3
    %p83 = scmp.ne.s32.totalorder %s78, %s80
    %p84 = scmp.eq.s32.totalorder %s9, 0
    %p85 = por %p83, %p84
    %p86 = scmp.ne.s32.totalorder %s78, %s80
    %p87 = scmp.eq.s32.totalorder %s14, 3
    %p88 = por %p86, %p87
    %p89 = scmp.ne.s32.totalorder %s80, %s81
    %p90 = scmp.eq.s32.totalorder %s14, 0
    %p91 = por %p89, %p90
    %p92 = scmp.ne.s32.totalorder %s80, %s81
    %p93 = scmp.eq.s32.totalorder %s15, 3
    %p94 = por %p92, %p93
    %p96 = scmp.ne.s32.totalorder %s81, %s95
    %p97 = scmp.eq.s32.totalorder %s15, 0
    %p98 = por %p96, %p97
    %s99 = ssub.s32 %s16, %s28
    %s100 = ssub.s32 %s17, %s24
    %s101 = sor.u32 %s99, %s100
    %p102 = scmp.eq.s32.totalorder %s101, 0
    %s104 = sadd.s32 %s103, 1
    %s105 = scalar_select %p102, %s103, %s104
    %p108 = pneg %p102
    %p109 = scmp.eq.s32.totalorder %s9, 3
    %p110 = por %p108, %p109
    %p111 = scmp.ne.s32.totalorder %s103, %s106
    %p112 = scmp.eq.s32.totalorder %s9, 0
    %p113 = por %p111, %p112
    %p114 = scmp.ne.s32.totalorder %s103, %s106
    %p115 = scmp.eq.s32.totalorder %s14, 3
    %p116 = por %p114, %p115
    %p117 = scmp.ne.s32.totalorder %s106, %s107
    %p118 = scmp.eq.s32.totalorder %s14, 0
    %p119 = por %p117, %p118
    %p120 = scmp.ne.s32.totalorder %s106, %s107
    %p121 = scmp.eq.s32.totalorder %s15, 3
    %p122 = por %p120, %p121
    %p124 = scmp.ne.s32.totalorder %s107, %s123
    %p125 = scmp.eq.s32.totalorder %s15, 0
    %p126 = por %p124, %p125
    %p127 = scmp.le.s32.totalorder 1, %s9
    %p128 = scmp.lt.s32.totalorder %s9, 5
    %p129 = pnand %p127, %p128
    %p130 = pneg %p129
    // Predicated region
    $region9: #{up_conv_forward.1} parent=5 // pred_check
      _
    $region10: #{up_conv_forward.1} parent=5 // pred_check_branch
      %132 = sbr.rel (%p129) target = $region12
    $region11: #{up_conv_forward.1} parent=5 // pred_region
      %s133 = ssub.s32 %s9, 1
      // Predicated region
      $region13: #{up_conv_forward.1} parent=11 // pred_check
        %p134 = pneg %p70
      $region14: #{up_conv_forward.1} parent=11 // pred_check_branch
        %136 = sbr.rel (%p134) target = $region16
      $region15: #{up_conv_forward.1} parent=11 // pred_region
        _
      $region16: #{up_conv_forward.1} parent=11 // pred_fallthru
        _
      // Predicated region
      $region17: #{up_conv_forward.1} parent=11 // pred_check
        %p137 = pneg %p91
      $region18: #{up_conv_forward.1} parent=11 // pred_check_branch
        %139 = sbr.rel (%p137) target = $region20
      $region19: #{up_conv_forward.1} parent=11 // pred_region
        _
      $region20: #{up_conv_forward.1} parent=11 // pred_fallthru
        _
    $region12: #{up_conv_forward.1} parent=5 // pred_fallthru
      _
    %p140 = scmp.lt.s32.totalorder %s9, 4
    // Predicated region
    $region21: #{up_conv_forward.1} parent=5 // pred_check
      %p141 = pneg %p140
    $region22: #{up_conv_forward.1} parent=5 // pred_check_branch
      %143 = sbr.rel (%p141) target = $region24
    $region23: #{up_conv_forward.1} parent=5 // pred_region
      // Predicated region
      $region25: #{up_conv_forward.1} parent=23 // pred_check
        %p144 = pneg %p43
      $region26: #{up_conv_forward.1} parent=23 // pred_check_branch
        %146 = sbr.rel (%p144) target = $region28
      $region27: #{up_conv_forward.1} parent=23 // pred_region
        %p147 = scmp.lt.s32.totalorder %s16, 1
        %s148 = scalar_select %p147, %s16, 1
        %p149 = scmp.lt.s32.totalorder %s17, 1
        %s150 = scalar_select %p149, %s17, 1
        %s151 = smul.addr %s150, 23
        %s152 = smul.addr %s148, 46
        %s153 = sadd.s32 %s151, %s152
        %s154 = smul.addr %s153, 4
        %s155 = scalar_lea.vmem %s0, %s154
      $region28: #{up_conv_forward.1} parent=23 // pred_fallthru
        _
    $region24: #{up_conv_forward.1} parent=5 // pred_fallthru
      _
    %p156 = scmp.le.s32.totalorder 1, %s9
    %p157 = scmp.lt.s32.totalorder %s9, 5
    %p158 = pnand %p156, %p157
    %p159 = pneg %p158
    // Predicated region
    $region29: #{up_conv_forward.1} parent=5 // pred_check
      _
    $region30: #{up_conv_forward.1} parent=5 // pred_check_branch
      %161 = sbr.rel (%p158) target = $region32
    $region31: #{up_conv_forward.1} parent=5 // pred_region
      %s162 = ssub.s32 %s9, 1
      %p163 = scmp.lt.s32.totalorder %s18, 1
      %s164 = scalar_select %p163, %s18, 1
      %p165 = scmp.lt.s32.totalorder %s19, 1
      %s166 = scalar_select %p165, %s19, 1
      %s167 = smul.addr %s166, 23
      %s168 = smul.addr %s164, 46
      %s169 = sadd.s32 %s167, %s168
      %s170 = smul.addr %s169, 4
      %s171 = scalar_lea.vmem %s0, %s170
      %p172 = pneg %p49
      %p173 = pneg %p46
      %p174 = pneg %p70
      %p175 = pneg %p67
      %p176 = pneg %p91
      %p177 = pneg %p88
      %p178 = pneg %p119
      %p179 = pneg %p116
      %p180 = scmp.lt.s32.totalorder %s18, 1
      %s181 = scalar_select %p180, %s18, 1
      %p182 = scmp.lt.s32.totalorder %s19, 1
      %s183 = scalar_select %p182, %s19, 1
      %s184 = smul.addr %s183, 18
      %s185 = smul.addr %s181, 36
      %s186 = sadd.s32 %s184, %s185
      %s187 = smul.addr %s186, 4
      %s188 = scalar_lea.vmem %s3, %s187
      %p189 = scmp.lt.s32.totalorder %s18, 1
      %s190 = scalar_select %p189, %s18, 1
      %p191 = scmp.lt.s32.totalorder %s19, 1
      %s192 = scalar_select %p191, %s19, 1
      %s193 = smul.addr %s192, 23
      %s194 = smul.addr %s190, 46
      %s195 = sadd.s32 %s193, %s194
      %s196 = smul.addr %s195, 4
      %s197 = scalar_lea.vmem %s0, %s196
      %p198 = scmp.lt.s32.totalorder %s18, 1
      %s199 = scalar_select %p198, %s18, 1
      %p200 = scmp.lt.s32.totalorder %s19, 1
      %s201 = scalar_select %p200, %s19, 1
      %s202 = smul.addr %s201, 18
      %s203 = smul.addr %s199, 36
      %s204 = sadd.s32 %s202, %s203
      %s205 = smul.addr %s204, 4
      %s206 = scalar_lea.vmem %s3, %s205
      %v208 = vld [vmem:[%s197] sm:$0xf]
      %v209 = vld [vmem:[%s197 + $0x4] sm:$0xf]
      %v210 = vld [vmem:[%s197 + $0x8] sm:$0xf]
      %v211 = vld [vmem:[%s197 + $0xc] sm:$0xf]
      %v212 = vld [vmem:[%s197 + $0x10] sm:$0xf]
      %v213 = vld [vmem:[%s197 + $0x14] sm:$0xf]
      %v214 = vld [vmem:[%s197 + $0x18] sm:$0xf]
      %v215 = vld [vmem:[%s197 + $0x1c] sm:$0xf]
      %v216 = vld [vmem:[%s197 + $0x20] sm:$0xf]
      %v217 = vld [vmem:[%s197 + $0x24] sm:$0xf]
      %v218 = vld [vmem:[%s197 + $0x28] sm:$0xf]
      %v219 = vld [vmem:[%s197 + $0x2c] sm:$0xf]
      %v220 = vld [vmem:[%s197 + $0x30] sm:$0xf]
      %v221 = vld [vmem:[%s197 + $0x34] sm:$0xf]
      %v222 = vld [vmem:[%s197 + $0x38] sm:$0xf]
      %v223 = vld [vmem:[%s197 + $0x3c] sm:$0xf]
      %v224 = vld [vmem:[%s197 + $0x40] sm:$0xf]
      %v225 = vld [vmem:[%s197 + $0x44] sm:$0xf]
      %v226 = vld [vmem:[%s197 + $0x48] sm:$0xf]
      %v227 = vld [vmem:[%s197 + $0x4c] sm:$0xf]
      %v228 = vld [vmem:[%s197 + $0x50] sm:$0xf]
      %v229 = vld [vmem:[%s197 + $0x54] sm:$0xf]
      %v230 = vld [vmem:[%s197 + $0x58] sm:$0xf]
      %v249 = vunpack.c.l.b16 %v208
      %v250 = vunpack.c.l.b16 %v209
      %v251 = vunpack.c.l.b16 %v210
      %v252 = vunpack.c.l.b16 %v211
      %v253 = vunpack.c.l.b16 %v212
      %v254 = vunpack.c.l.b16 %v213
      %v255 = vunpack.c.l.b16 %v214
      %v256 = vunpack.c.l.b16 %v215
      %v257 = vunpack.c.l.b16 %v216
      %v258 = vunpack.c.l.b16 %v217
      %v259 = vunpack.c.l.b16 %v218
      %v260 = vunpack.c.l.b16 %v219
      %v261 = vunpack.c.l.b16 %v220
      %v262 = vunpack.c.l.b16 %v221
      %v263 = vunpack.c.l.b16 %v222
      %v264 = vunpack.c.l.b16 %v223
      %v265 = vunpack.c.l.b16 %v224
      %v266 = vunpack.c.l.b16 %v225
      %v267 = vpack.c.b16 %v250, %v249
      %v268 = vpack.c.b16 %v252, %v251
      %v269 = vpack.c.b16 %v254, %v253
      %v270 = vpack.c.b16 %v256, %v255
      %v271 = vpack.c.b16 %v258, %v257
      %v272 = vpack.c.b16 %v260, %v259
      %v273 = vpack.c.b16 %v262, %v261
      %v274 = vpack.c.b16 %v264, %v263
      %v275 = vpack.c.b16 %v266, %v265
      %v277 = vunpack.c.l.b16 %v226
      %v278 = vpack.c.b16 %v277, %v277
      %vm279 = vsmask.f32 7424
      %v281 = vshrl.u32 %v267, 16
      %v283 = vshll.u32 %v267, 16
      %v285 = vrot.slane %v283, 1
      %v286 = vor.u32 %v281, %v285
      %v288 = vshll.u32 %v268, 16
      %v290 = vrot.slane %v288, 1
      %v291 = vsel %vm279, %v286, %v290
      %v292 = vshrl.u32 %v268, 16
      %v294 = vor.u32 %v292, %v290
      %v296 = vshll.u32 %v269, 16
      %v298 = vrot.slane %v296, 1
      %v299 = vsel %vm279, %v294, %v298
      %v300 = vshrl.u32 %v269, 16
      %v302 = vor.u32 %v300, %v298
      %v304 = vshll.u32 %v270, 16
      %v306 = vrot.slane %v304, 1
      %v307 = vsel %vm279, %v302, %v306
      %v308 = vshrl.u32 %v270, 16
      %v310 = vor.u32 %v308, %v306
      %v312 = vshll.u32 %v271, 16
      %v314 = vrot.slane %v312, 1
      %v315 = vsel %vm279, %v310, %v314
      %v316 = vshrl.u32 %v271, 16
      %v318 = vor.u32 %v316, %v314
      %v320 = vshll.u32 %v272, 16
      %v322 = vrot.slane %v320, 1
      %v323 = vsel %vm279, %v318, %v322
      %v324 = vshrl.u32 %v272, 16
      %v326 = vor.u32 %v324, %v322
      %v328 = vshll.u32 %v273, 16
      %v330 = vrot.slane %v328, 1
      %v331 = vsel %vm279, %v326, %v330
      %v332 = vshrl.u32 %v273, 16
      %v334 = vor.u32 %v332, %v330
      %v336 = vshll.u32 %v274, 16
      %v338 = vrot.slane %v336, 1
      %v339 = vsel %vm279, %v334, %v338
      %v340 = vshrl.u32 %v274, 16
      %v342 = vor.u32 %v340, %v338
      %v344 = vshll.u32 %v275, 16
      %v346 = vrot.slane %v344, 1
      %v347 = vsel %vm279, %v342, %v346
      %v348 = vshrl.u32 %v275, 16
      %v350 = vor.u32 %v348, %v346
      %v352 = vshll.u32 %v278, 16
      %v354 = vrot.slane %v352, 1
      %v355 = vsel %vm279, %v350, %v354
      %356 = vrot.lane.b32.xlu0 %v291, 32
      %v357 = vpop.permute.xlu0 %356
      %358 = vrot.lane.b32.xlu0 %v299, 32
      %v359 = vpop.permute.xlu0 %358
      %360 = vrot.lane.b32.xlu0 %v307, 32
      %v361 = vpop.permute.xlu0 %360
      %362 = vrot.lane.b32.xlu0 %v315, 32
      %v363 = vpop.permute.xlu0 %362
      %364 = vrot.lane.b32.xlu0 %v323, 32
      %v365 = vpop.permute.xlu0 %364
      %366 = vrot.lane.b32.xlu0 %v331, 32
      %v367 = vpop.permute.xlu0 %366
      %368 = vrot.lane.b32.xlu0 %v339, 32
      %v369 = vpop.permute.xlu0 %368
      %370 = vrot.lane.b32.xlu0 %v347, 32
      %v371 = vpop.permute.xlu0 %370
      %372 = vrot.lane.b32.xlu0 %v355, 32
      %v373 = vpop.permute.xlu0 %372
      %vm374 = vcmask 1046528
      %v375 = vrot.slane %v267, 1
      %v376 = vrot.slane %v268, 1
      %v377 = vsel %vm374, %v375, %v376
      %v378 = vrot.slane %v269, 1
      %v379 = vsel %vm374, %v376, %v378
      %v380 = vrot.slane %v270, 1
      %v381 = vsel %vm374, %v378, %v380
      %v382 = vrot.slane %v271, 1
      %v383 = vsel %vm374, %v380, %v382
      %v384 = vrot.slane %v272, 1
      %v385 = vsel %vm374, %v382, %v384
      %v386 = vrot.slane %v273, 1
      %v387 = vsel %vm374, %v384, %v386
      %v388 = vrot.slane %v274, 1
      %v389 = vsel %vm374, %v386, %v388
      %v390 = vrot.slane %v275, 1
      %v391 = vsel %vm374, %v388, %v390
      %v392 = vrot.slane %v278, 1
      %v393 = vsel %vm374, %v390, %v392
      %394 = vrot.lane.b32.xlu0 %v377, 64
      %v395 = vpop.permute.xlu0 %394
      %396 = vrot.lane.b32.xlu0 %v379, 64
      %v397 = vpop.permute.xlu0 %396
      %398 = vrot.lane.b32.xlu0 %v381, 64
      %v399 = vpop.permute.xlu0 %398
      %400 = vrot.lane.b32.xlu0 %v383, 64
      %v401 = vpop.permute.xlu0 %400
      %402 = vrot.lane.b32.xlu0 %v385, 64
      %v403 = vpop.permute.xlu0 %402
      %404 = vrot.lane.b32.xlu0 %v387, 64
      %v405 = vpop.permute.xlu0 %404
      %406 = vrot.lane.b32.xlu0 %v389, 64
      %v407 = vpop.permute.xlu0 %406
      %408 = vrot.lane.b32.xlu0 %v391, 64
      %v409 = vpop.permute.xlu0 %408
      %410 = vrot.lane.b32.xlu0 %v393, 64
      %v411 = vpop.permute.xlu0 %410
      %v414 = vunpack.c.l.b16 %v227
      %v415 = vunpack.c.l.b16 %v228
      %v416 = vpack.c.b16 %v414, %v277
      %v417 = vpack.c.b16 %v415, %v415
      %v418 = vrot.slane %v416, 1
      %v419 = vsel %vm374, %v390, %v418
      %v420 = vrot.slane %v417, 1
      %v421 = vsel %vm374, %v418, %v420
      %422 = vrot.lane.b32.xlu0 %v379, 96
      %v423 = vpop.permute.xlu0 %422
      %424 = vrot.lane.b32.xlu0 %v381, 96
      %v425 = vpop.permute.xlu0 %424
      %426 = vrot.lane.b32.xlu0 %v383, 96
      %v427 = vpop.permute.xlu0 %426
      %428 = vrot.lane.b32.xlu0 %v385, 96
      %v429 = vpop.permute.xlu0 %428
      %430 = vrot.lane.b32.xlu0 %v387, 96
      %v431 = vpop.permute.xlu0 %430
      %432 = vrot.lane.b32.xlu0 %v389, 96
      %v433 = vpop.permute.xlu0 %432
      %434 = vrot.lane.b32.xlu0 %v391, 96
      %v435 = vpop.permute.xlu0 %434
      %436 = vrot.lane.b32.xlu0 %v419, 96
      %v437 = vpop.permute.xlu0 %436
      %438 = vrot.lane.b32.xlu0 %v421, 96
      %v439 = vpop.permute.xlu0 %438
      %vm440 = vsmask.f32 6400
      %v441 = vrot.slane %v292, 1
      %v442 = vrot.slane %v288, 2
      %v443 = vor.u32 %v441, %v442
      %v444 = vrot.slane %v300, 1
      %v445 = vrot.slane %v296, 2
      %v446 = vor.u32 %v444, %v445
      %v447 = vsel %vm440, %v443, %v446
      %v448 = vrot.slane %v308, 1
      %v449 = vrot.slane %v304, 2
      %v450 = vor.u32 %v448, %v449
      %v451 = vsel %vm440, %v446, %v450
      %v452 = vrot.slane %v316, 1
      %v453 = vrot.slane %v312, 2
      %v454 = vor.u32 %v452, %v453
      %v455 = vsel %vm440, %v450, %v454
      %v456 = vrot.slane %v324, 1
      %v457 = vrot.slane %v320, 2
      %v458 = vor.u32 %v456, %v457
      %v459 = vsel %vm440, %v454, %v458
      %v460 = vrot.slane %v332, 1
      %v461 = vrot.slane %v328, 2
      %v462 = vor.u32 %v460, %v461
      %v463 = vsel %vm440, %v458, %v462
      %v464 = vrot.slane %v340, 1
      %v465 = vrot.slane %v336, 2
      %v466 = vor.u32 %v464, %v465
      %v467 = vsel %vm440, %v462, %v466
      %v468 = vrot.slane %v348, 1
      %v469 = vrot.slane %v344, 2
      %v470 = vor.u32 %v468, %v469
      %v471 = vsel %vm440, %v466, %v470
      %v473 = vshrl.u32 %v416, 16
      %v475 = vrot.slane %v473, 1
      %v476 = vshll.u32 %v416, 16
      %v478 = vrot.slane %v476, 2
      %v479 = vor.u32 %v475, %v478
      %v480 = vsel %vm440, %v470, %v479
      %v482 = vshrl.u32 %v417, 16
      %v484 = vrot.slane %v482, 1
      %v485 = vshll.u32 %v417, 16
      %v487 = vrot.slane %v485, 2
      %v488 = vor.u32 %v484, %v487
      %v489 = vsel %vm440, %v479, %v488
      %vm490 = vcmask 1045504
      %v491 = vrot.slane %v268, 2
      %v492 = vrot.slane %v269, 2
      %v493 = vsel %vm490, %v491, %v492
      %v494 = vrot.slane %v270, 2
      %v495 = vsel %vm490, %v492, %v494
      %v496 = vrot.slane %v271, 2
      %v497 = vsel %vm490, %v494, %v496
      %v498 = vrot.slane %v272, 2
      %v499 = vsel %vm490, %v496, %v498
      %v500 = vrot.slane %v273, 2
      %v501 = vsel %vm490, %v498, %v500
      %v502 = vrot.slane %v274, 2
      %v503 = vsel %vm490, %v500, %v502
      %v504 = vrot.slane %v275, 2
      %v505 = vsel %vm490, %v502, %v504
      %v506 = vrot.slane %v416, 2
      %v507 = vsel %vm490, %v504, %v506
      %v508 = vrot.slane %v417, 2
      %v509 = vsel %vm490, %v506, %v508
      %510 = vrot.lane.b32.xlu0 %v493, 32
      %v511 = vpop.permute.xlu0 %510
      %512 = vrot.lane.b32.xlu0 %v495, 32
      %v513 = vpop.permute.xlu0 %512
      %514 = vrot.lane.b32.xlu0 %v497, 32
      %v515 = vpop.permute.xlu0 %514
      %516 = vrot.lane.b32.xlu0 %v499, 32
      %v517 = vpop.permute.xlu0 %516
      %518 = vrot.lane.b32.xlu0 %v501, 32
      %v519 = vpop.permute.xlu0 %518
      %520 = vrot.lane.b32.xlu0 %v503, 32
      %v521 = vpop.permute.xlu0 %520
      %522 = vrot.lane.b32.xlu0 %v505, 32
      %v523 = vpop.permute.xlu0 %522
      %524 = vrot.lane.b32.xlu0 %v507, 32
      %v525 = vpop.permute.xlu0 %524
      %526 = vrot.lane.b32.xlu0 %v509, 32
      %v527 = vpop.permute.xlu0 %526
      %v530 = vunpack.c.l.b16 %v229
      %v531 = vunpack.c.l.b16 %v230
      %v532 = vpack.c.b16 %v530, %v415
      %v533 = vpack.c.b16 %v531, %v531
      %v534 = vrot.slane %v532, 2
      %v535 = vsel %vm490, %v506, %v534
      %v536 = vrot.slane %v533, 2
      %v537 = vsel %vm490, %v534, %v536
      %538 = vrot.lane.b32.xlu0 %v495, 64
      %v539 = vpop.permute.xlu0 %538
      %540 = vrot.lane.b32.xlu0 %v497, 64
      %v541 = vpop.permute.xlu0 %540
      %542 = vrot.lane.b32.xlu0 %v499, 64
      %v543 = vpop.permute.xlu0 %542
      %544 = vrot.lane.b32.xlu0 %v501, 64
      %v545 = vpop.permute.xlu0 %544
      %546 = vrot.lane.b32.xlu0 %v503, 64
      %v547 = vpop.permute.xlu0 %546
      %548 = vrot.lane.b32.xlu0 %v505, 64
      %v549 = vpop.permute.xlu0 %548
      %550 = vrot.lane.b32.xlu0 %v507, 64
      %v551 = vpop.permute.xlu0 %550
      %552 = vrot.lane.b32.xlu0 %v535, 64
      %v553 = vpop.permute.xlu0 %552
      %554 = vrot.lane.b32.xlu0 %v537, 64
      %v555 = vpop.permute.xlu0 %554
      %vm556 = vsmask.f32 5376
      %v557 = vrot.slane %v300, 2
      %v558 = vrot.slane %v296, 3
      %v559 = vor.u32 %v557, %v558
      %v560 = vrot.slane %v308, 2
      %v561 = vrot.slane %v304, 3
      %v562 = vor.u32 %v560, %v561
      %v563 = vsel %vm556, %v559, %v562
      %v564 = vrot.slane %v316, 2
      %v565 = vrot.slane %v312, 3
      %v566 = vor.u32 %v564, %v565
      %v567 = vsel %vm556, %v562, %v566
      %v568 = vrot.slane %v324, 2
      %v569 = vrot.slane %v320, 3
      %v570 = vor.u32 %v568, %v569
      %v571 = vsel %vm556, %v566, %v570
      %v572 = vrot.slane %v332, 2
      %v573 = vrot.slane %v328, 3
      %v574 = vor.u32 %v572, %v573
      %v575 = vsel %vm556, %v570, %v574
      %v576 = vrot.slane %v340, 2
      %v577 = vrot.slane %v336, 3
      %v578 = vor.u32 %v576, %v577
      %v579 = vsel %vm556, %v574, %v578
      %v580 = vrot.slane %v348, 2
      %v581 = vrot.slane %v344, 3
      %v582 = vor.u32 %v580, %v581
      %v583 = vsel %vm556, %v578, %v582
      %v584 = vrot.slane %v473, 2
      %v585 = vrot.slane %v476, 3
      %v586 = vor.u32 %v584, %v585
      %v587 = vsel %vm556, %v582, %v586
      %v589 = vshrl.u32 %v532, 16
      %v591 = vrot.slane %v589, 2
      %v592 = vshll.u32 %v532, 16
      %v594 = vrot.slane %v592, 3
      %v595 = vor.u32 %v591, %v594
      %v596 = vsel %vm556, %v586, %v595
      %v598 = vshrl.u32 %v533, 16
      %v600 = vrot.slane %v598, 2
      %v601 = vshll.u32 %v533, 16
      %v603 = vrot.slane %v601, 3
      %v604 = vor.u32 %v600, %v603
      %v605 = vsel %vm556, %v595, %v604
      %606 = vrot.lane.b32.xlu0 %v563, 96
      %v607 = vpop.permute.xlu0 %606
      %608 = vrot.lane.b32.xlu0 %v567, 96
      %v609 = vpop.permute.xlu0 %608
      %610 = vrot.lane.b32.xlu0 %v571, 96
      %v611 = vpop.permute.xlu0 %610
      %612 = vrot.lane.b32.xlu0 %v575, 96
      %v613 = vpop.permute.xlu0 %612
      %614 = vrot.lane.b32.xlu0 %v579, 96
      %v615 = vpop.permute.xlu0 %614
      %616 = vrot.lane.b32.xlu0 %v583, 96
      %v617 = vpop.permute.xlu0 %616
      %618 = vrot.lane.b32.xlu0 %v587, 96
      %v619 = vpop.permute.xlu0 %618
      %620 = vrot.lane.b32.xlu0 %v596, 96
      %v621 = vpop.permute.xlu0 %620
      %622 = vrot.lane.b32.xlu0 %v605, 96
      %v623 = vpop.permute.xlu0 %622
      %vm624 = vcmask 1044480
      %v625 = vrot.slane %v269, 3
      %v626 = vrot.slane %v270, 3
      %v627 = vsel %vm624, %v625, %v626
      %v628 = vrot.slane %v271, 3
      %v629 = vsel %vm624, %v626, %v628
      %v630 = vrot.slane %v272, 3
      %v631 = vsel %vm624, %v628, %v630
      %v632 = vrot.slane %v273, 3
      %v633 = vsel %vm624, %v630, %v632
      %v634 = vrot.slane %v274, 3
      %v635 = vsel %vm624, %v632, %v634
      %v636 = vrot.slane %v275, 3
      %v637 = vsel %vm624, %v634, %v636
      %v638 = vrot.slane %v416, 3
      %v639 = vsel %vm624, %v636, %v638
      %v640 = vrot.slane %v532, 3
      %v641 = vsel %vm624, %v638, %v640
      %v642 = vrot.slane %v533, 3
      %v643 = vsel %vm624, %v640, %v642
      %vm644 = vcmask 261120
      %v646 = vsel %vm644, %v267, %v357
      %v648 = vsel %vm644, %v268, %v359
      %v650 = vsel %vm644, %v269, %v361
      %v652 = vsel %vm644, %v270, %v363
      %v654 = vsel %vm644, %v271, %v365
      %v656 = vsel %vm644, %v272, %v367
      %v658 = vsel %vm644, %v273, %v369
      %v660 = vsel %vm644, %v274, %v371
      %v662 = vsel %vm644, %v275, %v373
      %vm663 = vcmask 523264
      %v665 = vsel %vm663, %v646, %v395
      %v667 = vsel %vm663, %v648, %v397
      %v669 = vsel %vm663, %v650, %v399
      %v671 = vsel %vm663, %v652, %v401
      %v673 = vsel %vm663, %v654, %v403
      %v675 = vsel %vm663, %v656, %v405
      %v677 = vsel %vm663, %v658, %v407
      %v679 = vsel %vm663, %v660, %v409
      %v681 = vsel %vm663, %v662, %v411
      %vm682 = vcmask 785408
      %v684 = vsel %vm682, %v665, %v423
      %v687 = vsel %vm682, %v667, %v425
      %v690 = vsel %vm682, %v669, %v427
      %v693 = vsel %vm682, %v671, %v429
      %v696 = vsel %vm682, %v673, %v431
      %v699 = vsel %vm682, %v675, %v433
      %v702 = vsel %vm682, %v677, %v435
      %v705 = vsel %vm682, %v679, %v437
      %v708 = vsel %vm682, %v681, %v439
      %v712 = vsel %vm644, %v447, %v511
      %v715 = vsel %vm644, %v451, %v513
      %v718 = vsel %vm644, %v455, %v515
      %v721 = vsel %vm644, %v459, %v517
      %v724 = vsel %vm644, %v463, %v519
      %v727 = vsel %vm644, %v467, %v521
      %v730 = vsel %vm644, %v471, %v523
      %v733 = vsel %vm644, %v480, %v525
      %v736 = vsel %vm644, %v489, %v527
      %v738 = vsel %vm663, %v712, %v539
      %v740 = vsel %vm663, %v715, %v541
      %v742 = vsel %vm663, %v718, %v543
      %v744 = vsel %vm663, %v721, %v545
      %v746 = vsel %vm663, %v724, %v547
      %v748 = vsel %vm663, %v727, %v549
      %v750 = vsel %vm663, %v730, %v551
      %v752 = vsel %vm663, %v733, %v553
      %v754 = vsel %vm663, %v736, %v555
      %v756 = vsel %vm682, %v738, %v607
      %v759 = vsel %vm682, %v740, %v609
      %v762 = vsel %vm682, %v742, %v611
      %v765 = vsel %vm682, %v744, %v613
      %v768 = vsel %vm682, %v746, %v615
      %v771 = vsel %vm682, %v748, %v617
      %v774 = vsel %vm682, %v750, %v619
      %v777 = vsel %vm682, %v752, %v621
      %v780 = vsel %vm682, %v754, %v623
      %v782 = vld [vmem:[%s1] sm:$0xf]
      %v783 = vld [vmem:[%s1 + $0x4] sm:$0xf]
      %v784 = vld [vmem:[%s1 + $0x8] sm:$0xf]
      %v785 = vld [vmem:[%s1 + $0xc] sm:$0xf]
      %v786 = vld [vmem:[%s1 + $0x10] sm:$0xf]
      %v787 = vld [vmem:[%s1 + $0x14] sm:$0xf]
      %v788 = vld [vmem:[%s1 + $0x18] sm:$0xf]
      %v789 = vld [vmem:[%s1 + $0x1c] sm:$0xf]
      %v790 = vld [vmem:[%s1 + $0x20] sm:$0xf]
      %v791 = vld [vmem:[%s1 + $0x24] sm:$0xf]
      %v792 = vld [vmem:[%s1 + $0x28] sm:$0xf]
      %v793 = vld [vmem:[%s1 + $0x2c] sm:$0xf]
      %v794 = vld [vmem:[%s1 + $0x30] sm:$0xf]
      %v795 = vld [vmem:[%s1 + $0x34] sm:$0xf]
      %v796 = vld [vmem:[%s1 + $0x38] sm:$0xf]
      %v797 = vld [vmem:[%s1 + $0x3c] sm:$0xf]
      %v798 = vld [vmem:[%s1 + $0x40] sm:$0xf]
      %v799 = vld [vmem:[%s1 + $0x44] sm:$0xf]
      %v800 = vld [vmem:[%s1 + $0x48] sm:$0xf]
      %v801 = vld [vmem:[%s1 + $0x4c] sm:$0xf]
      %v802 = vld [vmem:[%s1 + $0x50] sm:$0xf]
      %v803 = vld [vmem:[%s1 + $0x54] sm:$0xf]
      %v804 = vld [vmem:[%s1 + $0x58] sm:$0xf]
      %v805 = vld [vmem:[%s1 + $0x5c] sm:$0xf]
      %v806 = vld [vmem:[%s1 + $0x60] sm:$0xf]
      %v807 = vld [vmem:[%s1 + $0x64] sm:$0xf]
      %v808 = vld [vmem:[%s1 + $0x68] sm:$0xf]
      %v809 = vld [vmem:[%s1 + $0x6c] sm:$0xf]
      %v810 = vld [vmem:[%s1 + $0x70] sm:$0xf]
      %v811 = vld [vmem:[%s1 + $0x74] sm:$0xf]
      %v812 = vld [vmem:[%s1 + $0x78] sm:$0xf]
      %v813 = vld [vmem:[%s1 + $0x7c] sm:$0xf]
      %v814 = vld [vmem:[%s1 + $0x80] sm:$0xf]
      %v815 = vld [vmem:[%s1 + $0x84] sm:$0xf]
      %v816 = vld [vmem:[%s1 + $0x88] sm:$0xf]
      %v817 = vld [vmem:[%s1 + $0x8c] sm:$0xf]
      %v818 = vld [vmem:[%s2] sm:$0x1]
      %v820 = vlaneseq
      %v821 = vshrl.u32 %v820, 7
      %v822 = vsub.s32 0, %v821
      %v823 = vrot.slane %v818, %v822
      %v861 = vunpack.c.l.b16 %v782
      %v862 = vunpack.c.l.b16 %v783
      %v863 = vunpack.c.l.b16 %v784
      %v864 = vunpack.c.l.b16 %v785
      %v865 = vunpack.c.l.b16 %v786
      %v866 = vunpack.c.l.b16 %v787
      %v867 = vunpack.c.l.b16 %v788
      %v868 = vunpack.c.l.b16 %v789
      %v869 = vunpack.c.l.b16 %v790
      %v870 = vunpack.c.l.b16 %v791
      %v871 = vunpack.c.l.b16 %v792
      %v872 = vunpack.c.l.b16 %v793
      %v873 = vunpack.c.l.b16 %v794
      %v874 = vunpack.c.l.b16 %v795
      %v875 = vunpack.c.l.b16 %v796
      %v876 = vunpack.c.l.b16 %v797
      %v877 = vunpack.c.l.b16 %v798
      %v878 = vunpack.c.l.b16 %v799
      %v879 = vunpack.c.l.b16 %v800
      %v880 = vunpack.c.l.b16 %v801
      %v881 = vunpack.c.l.b16 %v802
      %v882 = vunpack.c.l.b16 %v803
      %v883 = vunpack.c.l.b16 %v804
      %v884 = vunpack.c.l.b16 %v805
      %v885 = vunpack.c.l.b16 %v806
      %v886 = vunpack.c.l.b16 %v807
      %v887 = vunpack.c.l.b16 %v808
      %v888 = vunpack.c.l.b16 %v809
      %v889 = vunpack.c.l.b16 %v810
      %v890 = vunpack.c.l.b16 %v811
      %v891 = vunpack.c.l.b16 %v812
      %v892 = vunpack.c.l.b16 %v813
      %v893 = vunpack.c.l.b16 %v814
      %v894 = vunpack.c.l.b16 %v815
      %v895 = vunpack.c.l.b16 %v816
      %v896 = vunpack.c.l.b16 %v817
      %v897 = vpack.c.b16 %v862, %v861
      %v898 = vpack.c.b16 %v864, %v863
      %v899 = vpack.c.b16 %v866, %v865
      %v900 = vpack.c.b16 %v868, %v867
      %v901 = vpack.c.b16 %v870, %v869
      %v902 = vpack.c.b16 %v872, %v871
      %v903 = vpack.c.b16 %v874, %v873
      %v904 = vpack.c.b16 %v876, %v875
      %v905 = vpack.c.b16 %v878, %v877
      %v906 = vpack.c.b16 %v880, %v879
      %v907 = vpack.c.b16 %v882, %v881
      %v908 = vpack.c.b16 %v884, %v883
      %v909 = vpack.c.b16 %v886, %v885
      %v910 = vpack.c.b16 %v888, %v887
      %v911 = vpack.c.b16 %v890, %v889
      %v912 = vpack.c.b16 %v892, %v891
      %v913 = vpack.c.b16 %v894, %v893
      %v914 = vpack.c.b16 %v896, %v895
      %v934 = vsel %vm644, %v627, 0
      %v937 = vsel %vm644, %v629, 0
      %v940 = vsel %vm644, %v631, 0
      %v943 = vsel %vm644, %v633, 0
      %v946 = vsel %vm644, %v635, 0
      %v949 = vsel %vm644, %v637, 0
      %v952 = vsel %vm644, %v639, 0
      %v955 = vsel %vm644, %v641, 0
      %v958 = vsel %vm644, %v643, 0
      %960 = vmatprep.subr.bf16.mxu0 0
      %961 = vmatpush1.bf16.msra.mxu0 %v904
      %962 = vmatprep.subr.bf16.mxu0 0
      %963 = vmatpush1.bf16.msra.mxu0 %v903
      %964 = vmatprep.subr.bf16.mxu0 0
      %965 = vmatpush1.bf16.msra.mxu0 %v902
      %966 = vmatprep.subr.bf16.mxu0 0
      %967 = vmatpush1.bf16.msra.mxu0 %v901
      %968 = vmatprep.subr.bf16.mxu0 0
      %969 = vmatpush1.bf16.msra.mxu0 %v900
      %970 = vmatprep.subr.bf16.mxu0 0
      %971 = vmatpush1.bf16.msra.mxu0 %v899
      %972 = vmatprep.subr.bf16.mxu0 0
      %973 = vmatpush1.bf16.msra.mxu0 %v898
      %974 = vmatprep.subr.bf16.mxu0 0
      %975 = vmatpush1.bf16.msra.mxu0 %v897
      %976 = vmatprep.subr.bf16.mxu0 0
      %977 = vmatpush2.bf16.msra.mxu0 %v912
      %978 = vmatprep.subr.bf16.mxu0 0
      %979 = vmatpush2.bf16.msra.mxu0 %v911
      %980 = vmatprep.subr.bf16.mxu0 0
      %981 = vmatpush2.bf16.msra.mxu0 %v910
      %982 = vmatprep.subr.bf16.mxu0 0
      %983 = vmatpush2.bf16.msra.mxu0 %v909
      %984 = vmatprep.subr.bf16.mxu0 0
      %985 = vmatpush2.bf16.msra.mxu0 %v908
      %986 = vmatprep.subr.bf16.mxu0 0
      %987 = vmatpush2.bf16.msra.mxu0 %v907
      %988 = vmatprep.subr.bf16.mxu0 0
      %989 = vmatpush2.bf16.msra.mxu0 %v906
      %990 = vmatprep.subr.bf16.mxu0 0
      %991 = vmatpush2.bf16.msra.mxu0 %v905
      %992 = vmatprep.mubr.bf16.mxu0 %v756
      %993 = vmatmul.mubr.bf16.gmra.mxu0 %v684
      %v994 = vpop.f32.mrf.mxu0
      %v995 = vadd.f32 %v823, %v994
      %v996 = vpop.f32.mrf.mxu0
      %v997 = vpop.f32.mrf.mxu0
      %v998 = vadd.f32 %v823, %v997
      %v999 = vpop.f32.mrf.mxu0
      %1000 = vmatprep.mubr.bf16.mxu0 %v759
      %1001 = vmatmul.mubr.bf16.gmra.mxu0 %v687
      %v1002 = vpop.f32.mrf.mxu0
      %v1003 = vadd.f32 %v823, %v1002
      %v1004 = vpop.f32.mrf.mxu0
      %v1005 = vpop.f32.mrf.mxu0
      %v1006 = vadd.f32 %v823, %v1005
      %v1007 = vpop.f32.mrf.mxu0
      %1008 = vmatprep.mubr.bf16.mxu0 %v762
      %1009 = vmatmul.mubr.bf16.gmra.mxu0 %v690
      %v1010 = vpop.f32.mrf.mxu0
      %v1011 = vadd.f32 %v823, %v1010
      %v1012 = vpop.f32.mrf.mxu0
      %v1013 = vpop.f32.mrf.mxu0
      %v1014 = vadd.f32 %v823, %v1013
      %v1015 = vpop.f32.mrf.mxu0
      %1016 = vmatprep.mubr.bf16.mxu0 %v765
      %1017 = vmatmul.mubr.bf16.gmra.mxu0 %v693
      %v1018 = vpop.f32.mrf.mxu0
      %v1019 = vadd.f32 %v823, %v1018
      %v1020 = vpop.f32.mrf.mxu0
      %v1021 = vpop.f32.mrf.mxu0
      %v1022 = vadd.f32 %v823, %v1021
      %v1023 = vpop.f32.mrf.mxu0
      %1024 = vmatprep.mubr.bf16.mxu0 %v768
      %1025 = vmatmul.mubr.bf16.gmra.mxu0 %v696
      %v1026 = vpop.f32.mrf.mxu0
      %v1027 = vadd.f32 %v823, %v1026
      %v1028 = vpop.f32.mrf.mxu0
      %v1029 = vpop.f32.mrf.mxu0
      %v1030 = vadd.f32 %v823, %v1029
      %v1031 = vpop.f32.mrf.mxu0
      %1032 = vmatprep.mubr.bf16.mxu0 %v771
      %1033 = vmatmul.mubr.bf16.gmra.mxu0 %v699
      %v1034 = vpop.f32.mrf.mxu0
      %v1035 = vadd.f32 %v823, %v1034
      %v1036 = vpop.f32.mrf.mxu0
      %v1037 = vpop.f32.mrf.mxu0
      %v1038 = vadd.f32 %v823, %v1037
      %v1039 = vpop.f32.mrf.mxu0
      %1040 = vmatprep.mubr.bf16.mxu0 %v774
      %1041 = vmatmul.mubr.bf16.gmra.mxu0 %v702
      %v1042 = vpop.f32.mrf.mxu0
      %v1043 = vadd.f32 %v823, %v1042
      %v1044 = vpop.f32.mrf.mxu0
      %v1045 = vpop.f32.mrf.mxu0
      %v1046 = vadd.f32 %v823, %v1045
      %v1047 = vpop.f32.mrf.mxu0
      %1048 = vmatprep.mubr.bf16.mxu0 %v777
      %1049 = vmatmul.mubr.bf16.gmra.mxu0 %v705
      %v1050 = vpop.f32.mrf.mxu0
      %v1051 = vadd.f32 %v823, %v1050
      %v1052 = vpop.f32.mrf.mxu0
      %v1053 = vpop.f32.mrf.mxu0
      %v1054 = vadd.f32 %v823, %v1053
      %v1055 = vpop.f32.mrf.mxu0
      %1056 = vmatprep.mubr.bf16.mxu0 %v780
      %1057 = vmatmul.mubr.bf16.gmra.mxu0 %v708
      %v1058 = vpop.f32.mrf.mxu0
      %v1059 = vadd.f32 %v823, %v1058
      %v1060 = vpop.f32.mrf.mxu0
      %v1061 = vpop.f32.mrf.mxu0
      %v1062 = vadd.f32 %v823, %v1061
      %v1063 = vpop.f32.mrf.mxu0
      %1064 = vdwg.mxu0
      %1065 = vmatprep.subr.bf16.mxu0 0
      %1066 = vmatpush1.bf16.msra.mxu0 0
      %1067 = vmatprep.subr.bf16.mxu0 0
      %1068 = vmatpush1.bf16.msra.mxu0 0
      %1069 = vmatprep.subr.bf16.mxu0 0
      %1070 = vmatpush1.bf16.msra.mxu0 0
      %1071 = vmatprep.subr.bf16.mxu0 0
      %1072 = vmatpush1.bf16.msra.mxu0 0
      %1073 = vmatprep.subr.bf16.mxu0 0
      %1074 = vmatpush1.bf16.msra.mxu0 0
      %1075 = vmatprep.subr.bf16.mxu0 0
      %1076 = vmatpush1.bf16.msra.mxu0 0
      %1077 = vmatprep.subr.bf16.mxu0 0
      %1078 = vmatpush1.bf16.msra.mxu0 %v914
      %1079 = vmatprep.subr.bf16.mxu0 0
      %1080 = vmatpush1.bf16.msra.mxu0 %v913
      %1081 = vmatprep.subr.bf16.mxu0 0
      %1082 = vmatpush2.bf16.msra.mxu0 0
      %1083 = vmatprep.subr.bf16.mxu0 0
      %1084 = vmatpush2.bf16.msra.mxu0 0
      %1085 = vmatprep.subr.bf16.mxu0 0
      %1086 = vmatpush2.bf16.msra.mxu0 0
      %1087 = vmatprep.subr.bf16.mxu0 0
      %1088 = vmatpush2.bf16.msra.mxu0 0
      %1089 = vmatprep.subr.bf16.mxu0 0
      %1090 = vmatpush2.bf16.msra.mxu0 0
      %1091 = vmatprep.subr.bf16.mxu0 0
      %1092 = vmatpush2.bf16.msra.mxu0 0
      %1093 = vmatprep.subr.bf16.mxu0 0
      %1094 = vmatpush2.bf16.msra.mxu0 0
      %1095 = vmatprep.subr.bf16.mxu0 0
      %1096 = vmatpush2.bf16.msra.mxu0 0
      %1097 = vmatprep.mubr.bf16.mxu0 0
      %1098 = vmatmul.mubr.bf16.gmra.mxu0 %v934
      %v1099 = vpop.f32.mrf.mxu0
      %v1100 = vadd.f32 %v995, %v1099
      %v1101 = vpop.f32.mrf.mxu0
      %v1102 = vpop.f32.mrf.mxu0
      %v1103 = vadd.f32 %v998, %v1102
      %v1104 = vpop.f32.mrf.mxu0
      %1105 = vmatprep.mubr.bf16.mxu0 0
      %1106 = vmatmul.mubr.bf16.gmra.mxu0 %v937
      %v1107 = vpop.f32.mrf.mxu0
      %v1108 = vadd.f32 %v1003, %v1107
      %v1109 = vpop.f32.mrf.mxu0
      %v1110 = vpop.f32.mrf.mxu0
      %v1111 = vadd.f32 %v1006, %v1110
      %v1112 = vpop.f32.mrf.mxu0
      %1113 = vmatprep.mubr.bf16.mxu0 0
      %1114 = vmatmul.mubr.bf16.gmra.mxu0 %v940
      %v1115 = vpop.f32.mrf.mxu0
      %v1116 = vadd.f32 %v1011, %v1115
      %v1117 = vpop.f32.mrf.mxu0
      %v1118 = vpop.f32.mrf.mxu0
      %v1119 = vadd.f32 %v1014, %v1118
      %v1120 = vpop.f32.mrf.mxu0
      %1121 = vmatprep.mubr.bf16.mxu0 0
      %1122 = vmatmul.mubr.bf16.gmra.mxu0 %v943
      %v1123 = vpop.f32.mrf.mxu0
      %v1124 = vadd.f32 %v1019, %v1123
      %v1125 = vpop.f32.mrf.mxu0
      %v1126 = vpop.f32.mrf.mxu0
      %v1127 = vadd.f32 %v1022, %v1126
      %v1128 = vpop.f32.mrf.mxu0
      %1129 = vmatprep.mubr.bf16.mxu0 0
      %1130 = vmatmul.mubr.bf16.gmra.mxu0 %v946
      %v1131 = vpop.f32.mrf.mxu0
      %v1132 = vadd.f32 %v1027, %v1131
      %v1133 = vpop.f32.mrf.mxu0
      %v1134 = vpop.f32.mrf.mxu0
      %v1135 = vadd.f32 %v1030, %v1134
      %v1136 = vpop.f32.mrf.mxu0
      %1137 = vmatprep.mubr.bf16.mxu0 0
      %1138 = vmatmul.mubr.bf16.gmra.mxu0 %v949
      %v1139 = vpop.f32.mrf.mxu0
      %v1140 = vadd.f32 %v1035, %v1139
      %v1141 = vpop.f32.mrf.mxu0
      %v1142 = vpop.f32.mrf.mxu0
      %v1143 = vadd.f32 %v1038, %v1142
      %v1144 = vpop.f32.mrf.mxu0
      %1145 = vmatprep.mubr.bf16.mxu0 0
      %1146 = vmatmul.mubr.bf16.gmra.mxu0 %v952
      %v1147 = vpop.f32.mrf.mxu0
      %v1148 = vadd.f32 %v1043, %v1147
      %v1149 = vpop.f32.mrf.mxu0
      %v1150 = vpop.f32.mrf.mxu0
      %v1151 = vadd.f32 %v1046, %v1150
      %v1152 = vpop.f32.mrf.mxu0
      %1153 = vmatprep.mubr.bf16.mxu0 0
      %1154 = vmatmul.mubr.bf16.gmra.mxu0 %v955
      %v1155 = vpop.f32.mrf.mxu0
      %v1156 = vadd.f32 %v1051, %v1155
      %v1157 = vpop.f32.mrf.mxu0
      %v1158 = vpop.f32.mrf.mxu0
      %v1159 = vadd.f32 %v1054, %v1158
      %v1160 = vpop.f32.mrf.mxu0
      %1161 = vmatprep.mubr.bf16.mxu0 0
      %1162 = vmatmul.mubr.bf16.gmra.mxu0 %v958
      %v1163 = vpop.f32.mrf.mxu0
      %v1164 = vadd.f32 %v1059, %v1163
      %v1165 = vpop.f32.mrf.mxu0
      %v1166 = vpop.f32.mrf.mxu0
      %v1167 = vadd.f32 %v1062, %v1166
      %v1168 = vpop.f32.mrf.mxu0
      %1169 = vdwg.mxu0
      %v1170 = vmax.f32 %v1100, 0.0
      %v1171 = vmax.f32 %v1103, 0.0
      %v1172 = vmax.f32 %v1108, 0.0
      %v1173 = vmax.f32 %v1111, 0.0
      %v1174 = vmax.f32 %v1116, 0.0
      %v1175 = vmax.f32 %v1119, 0.0
      %v1176 = vmax.f32 %v1124, 0.0
      %v1177 = vmax.f32 %v1127, 0.0
      %v1178 = vmax.f32 %v1132, 0.0
      %v1179 = vmax.f32 %v1135, 0.0
      %v1180 = vmax.f32 %v1140, 0.0
      %v1181 = vmax.f32 %v1143, 0.0
      %v1182 = vmax.f32 %v1148, 0.0
      %v1183 = vmax.f32 %v1151, 0.0
      %v1184 = vmax.f32 %v1156, 0.0
      %v1185 = vmax.f32 %v1159, 0.0
      %v1186 = vmax.f32 %v1164, 0.0
      %v1187 = vmax.f32 %v1167, 0.0
      %v1188 = vpack.c.bf16 %v1171, %v1170
      %v1189 = vpack.c.bf16 %v1173, %v1172
      %v1190 = vpack.c.bf16 %v1175, %v1174
      %v1191 = vpack.c.bf16 %v1177, %v1176
      %v1192 = vpack.c.bf16 %v1179, %v1178
      %v1193 = vpack.c.bf16 %v1181, %v1180
      %v1194 = vpack.c.bf16 %v1183, %v1182
      %v1195 = vpack.c.bf16 %v1185, %v1184
      %v1196 = vpack.c.bf16 %v1187, %v1186
      %v1206 = vunpack.c.l.b16 %v1188
      %v1207 = vunpack.c.h.b16 %v1188
      %v1208 = vunpack.c.l.b16 %v1189
      %v1209 = vunpack.c.h.b16 %v1189
      %v1210 = vunpack.c.l.b16 %v1190
      %v1211 = vunpack.c.h.b16 %v1190
      %v1212 = vunpack.c.l.b16 %v1191
      %v1213 = vunpack.c.h.b16 %v1191
      %v1214 = vunpack.c.l.b16 %v1192
      %v1215 = vunpack.c.h.b16 %v1192
      %v1216 = vunpack.c.l.b16 %v1193
      %v1217 = vunpack.c.h.b16 %v1193
      %v1218 = vunpack.c.l.b16 %v1194
      %v1219 = vunpack.c.h.b16 %v1194
      %v1220 = vunpack.c.l.b16 %v1195
      %v1221 = vunpack.c.h.b16 %v1195
      %v1222 = vunpack.c.l.b16 %v1196
      %v1223 = vunpack.c.h.b16 %v1196
      %v1224 = vpack.c.b16 %v1206, %v1206
      %v1225 = vpack.c.b16 %v1207, %v1207
      %v1226 = vpack.c.b16 %v1208, %v1208
      %v1227 = vpack.c.b16 %v1209, %v1209
      %v1228 = vpack.c.b16 %v1210, %v1210
      %v1229 = vpack.c.b16 %v1211, %v1211
      %v1230 = vpack.c.b16 %v1212, %v1212
      %v1231 = vpack.c.b16 %v1213, %v1213
      %v1232 = vpack.c.b16 %v1214, %v1214
      %v1233 = vpack.c.b16 %v1215, %v1215
      %v1234 = vpack.c.b16 %v1216, %v1216
      %v1235 = vpack.c.b16 %v1217, %v1217
      %v1236 = vpack.c.b16 %v1218, %v1218
      %v1237 = vpack.c.b16 %v1219, %v1219
      %v1238 = vpack.c.b16 %v1220, %v1220
      %v1239 = vpack.c.b16 %v1221, %v1221
      %v1240 = vpack.c.b16 %v1222, %v1222
      %v1241 = vpack.c.b16 %v1223, %v1223
      %1260 = vst [vmem:[%s206] sm:$0xf] %v1224
      %1261 = vst [vmem:[%s206 + $0x4] sm:$0xf] %v1225
      %1262 = vst [vmem:[%s206 + $0x8] sm:$0xf] %v1226
      %1263 = vst [vmem:[%s206 + $0xc] sm:$0xf] %v1227
      %1264 = vst [vmem:[%s206 + $0x10] sm:$0xf] %v1228
      %1265 = vst [vmem:[%s206 + $0x14] sm:$0xf] %v1229
      %1266 = vst [vmem:[%s206 + $0x18] sm:$0xf] %v1230
      %1267 = vst [vmem:[%s206 + $0x1c] sm:$0xf] %v1231
      %1268 = vst [vmem:[%s206 + $0x20] sm:$0xf] %v1232
      %1269 = vst [vmem:[%s206 + $0x24] sm:$0xf] %v1233
      %1270 = vst [vmem:[%s206 + $0x28] sm:$0xf] %v1234
      %1271 = vst [vmem:[%s206 + $0x2c] sm:$0xf] %v1235
      %1272 = vst [vmem:[%s206 + $0x30] sm:$0xf] %v1236
      %1273 = vst [vmem:[%s206 + $0x34] sm:$0xf] %v1237
      %1274 = vst [vmem:[%s206 + $0x38] sm:$0xf] %v1238
      %1275 = vst [vmem:[%s206 + $0x3c] sm:$0xf] %v1239
      %1276 = vst [vmem:[%s206 + $0x40] sm:$0xf] %v1240
      %1277 = vst [vmem:[%s206 + $0x44] sm:$0xf] %v1241
      %p1278 = scmp.lt.s32.totalorder %s18, 1
      %s1279 = scalar_select %p1278, %s18, 1
      %p1280 = scmp.lt.s32.totalorder %s19, 1
      %s1281 = scalar_select %p1280, %s19, 1
      %s1282 = smul.addr %s1281, 18
      %s1283 = smul.addr %s1279, 36
      %s1284 = sadd.s32 %s1282, %s1283
      %s1285 = smul.addr %s1284, 4
      %s1286 = scalar_lea.vmem %s3, %s1285
      // Predicated region
      $region33: #{up_conv_forward.1} parent=31 // pred_check
        %p1287 = pneg %p116
      $region34: #{up_conv_forward.1} parent=31 // pred_check_branch
        %1289 = sbr.rel (%p1287) target = $region36
      $region35: #{up_conv_forward.1} parent=31 // pred_region
        _
      $region36: #{up_conv_forward.1} parent=31 // pred_fallthru
        _
    $region32: #{up_conv_forward.1} parent=5 // pred_fallthru
      _
    %p1290 = scmp.le.s32.totalorder 2, %s9
    // Predicated region
    $region37: #{up_conv_forward.1} parent=5 // pred_check
      %p1291 = pneg %p1290
    $region38: #{up_conv_forward.1} parent=5 // pred_check_branch
      %1293 = sbr.rel (%p1291) target = $region40
    $region39: #{up_conv_forward.1} parent=5 // pred_region
      %s1294 = ssub.s32 %s9, 2
      // Predicated region
      $region41: #{up_conv_forward.1} parent=39 // pred_check
        %p1295 = pneg %p122
      $region42: #{up_conv_forward.1} parent=39 // pred_check_branch
        %1297 = sbr.rel (%p1295) target = $region44
      $region43: #{up_conv_forward.1} parent=39 // pred_region
        %p1298 = scmp.lt.s32.totalorder %s20, 1
        %s1299 = scalar_select %p1298, %s20, 1
        %p1300 = scmp.lt.s32.totalorder %s21, 1
        %s1301 = scalar_select %p1300, %s21, 1
        %s1302 = smul.addr %s1301, 18
        %s1303 = smul.addr %s1299, 36
        %s1304 = sadd.s32 %s1302, %s1303
        %s1305 = smul.addr %s1304, 4
        %s1306 = scalar_lea.vmem %s3, %s1305
      $region44: #{up_conv_forward.1} parent=39 // pred_fallthru
        _
    $region40: #{up_conv_forward.1} parent=5 // pred_fallthru
      _
  $region6: #{up_conv_forward.1} parent=0 // loop_footer
    %s13 = sadd.s32 1, %s9
  $region7: #{up_conv_forward.1} parent=0 // loop_footer_branch
    %8 = sbr.rel target = $region3
  $region8: #{up_conv_forward.1} parent=0 // loop_exit
    _

</llo_original>
